<compile_context>
chip_gen: v5e
topology: v5e:2x2
jax: 0.10.0
libtpu: 0.0.40
codegen_flags: <defaults>
</compile_context>

<pallas_src>
import functools
import numpy as np
import jax
import jax.numpy as jnp
from jax.experimental import pallas as pl
from jax.experimental.pallas import tpu as pltpu

MAX_LENGTH = 15


def _round_up(x, k):
    return ((x + k - 1) // k) * k


def _sigmoid(x):
    # matches torch.sigmoid; exact division (feeds the carried state, so no approx rcp)
    return 1.0 / (1.0 + jnp.exp(-x))


def _attn_decoder_kernel(
    # inputs (all resident in VMEM for the whole decode)
    y_ref,        # (T, 1, m)   f32   embedded previous tokens
    s0_ref,       # (1, n)      f32   initial hidden
    h0_ref,       # (L, 2n)     f32   initial encoder outputs
    w_s_all_ref,  # (n, n'+2n)  bf16  [Wa.T | Uz | Ur]
    ua_t_ref,     # (2n, n')    bf16  Ua.T (used once, to init the Uh carry)
    va_ref,       # (1, n')     f32   Va as a row (VPU operand)
    w_yc_ref,     # (m+2n, 7n)  bf16  [[Wz|Wr|W|Vo.T_perm];[Cz|Cr|C|Co.T_perm]]
    w_u_s_ref,    # (n, n)      bf16  U
    w_u_deep_ref, # (n, 4n)     bf16  Uo.T, columns permuted even|odd
    wo_t_ref,     # (2n, m)     bf16  Wo.T
    # outputs
    packed_ref,   # (T, 1, P)   f32   [ log_softmax | s_new | 0-pad ]
    alpha_ref,    # (T, L, PA)  f32   attention-scaled encoder outputs, lane-padded
):
    f32, bf16 = jnp.float32, jnp.bfloat16
    dot = functools.partial(jnp.dot, preferred_element_type=f32)

    T = y_ref.shape[0]
    m = y_ref.shape[2]
    n = s0_ref.shape[1]
    L, two_n = h0_ref.shape
    n_prime = va_ref.shape[1]
    P = packed_ref.shape[2]
    PA = alpha_ref.shape[2]

    # ---- loop-invariant hoists (JAX does not CSE broadcasts / constants) ----
    va_b = jnp.broadcast_to(va_ref[...], (L, n_prime))
    pad_packed = jnp.zeros((1, P - (m + n)), f32) if P > (m + n) else None
    pad_alpha = jnp.zeros((L, PA - two_n), f32) if PA > two_n else None

    # ---- carried state lives in vregs (no VMEM scratch round-trips) ----
    s = s0_ref[...]                               # (1, n)
    h = h0_ref[...]                               # (L, 2n); torch scales it in place in get_c
    uh = dot(h.astype(bf16), ua_t_ref[...])       # (L, n')  carried Ua-projection

    # T is static and small (<= MAX_LENGTH): a trace-time-unrolled loop gives the scheduler
    # full cross-step visibility.  Switch to lax.fori_loop for long sequences.
    for t in range(T):
        y = y_ref[t]                                             # (1, m)

        # --- fused s-operand matmul: [Wa.T | Uz | Ur] ---
        s_proj = dot(s.astype(bf16), w_s_all_ref[...])           # (1, n' + 2n)
        ws = s_proj[:, :n_prime]                                 # (1, n')
        us_zr = s_proj[:, n_prime:]                              # (1, 2n)

        # --- additive attention (LSTM.get_c); Ua @ h carried as uh ---
        pre = jnp.tanh(ws + uh)                                  # (L, n')
        scores = jnp.sum(pre * va_b, axis=1, keepdims=True)      # (L, 1)
        scores = scores - jnp.max(scores, axis=0, keepdims=True) # softmax-invariant
        e = jnp.exp(scores)
        w_attn = e / jnp.sum(e, axis=0, keepdims=True)           # exact div (feeds carries)
        alpha = h * w_attn                                       # (L, 2n)
        ctx = jnp.sum(alpha, axis=0, keepdims=True)              # (1, 2n)
        h = alpha                                                # torch's in-place scaling
        uh = uh * w_attn                                         # commutes with @ Ua.T

        # --- y|ctx partials for all gates: ONE matmul against the fused slab ---
        lhs = jnp.concatenate([y, ctx], axis=1).astype(bf16)     # (1, m+2n)
        yc = dot(lhs, w_yc_ref[...])                             # (1, 7n)
        yc_zr = yc[:, :two_n]
        yc_s = yc[:, two_n:two_n + n]
        yc_d = yc[:, two_n + n:]

        # gates z, r
        zr = _sigmoid(yc_zr + us_zr)                             # (1, 2n)
        z = zr[:, :n]
        r = zr[:, n:]

        # s_tilde / new hidden (sigmoid, as in the reference)
        s_tilde = _sigmoid(yc_s + dot((r * s).astype(bf16), w_u_s_ref[...]))
        s_new = (1.0 - z) * s + z * s_tilde
        s = s_new

        # deep output + pairwise maxout (columns pre-permuted: even | odd halves)
        t_tilde = _sigmoid(yc_d + dot(s_new.astype(bf16), w_u_deep_ref[...]))   # (1, 4n)
        tt = jnp.maximum(t_tilde[:, :two_n], t_tilde[:, two_n:])                # (1, 2n)

        # logits -> stable log(softmax(., dim=0))
        logits = dot(tt.astype(bf16), wo_t_ref[...])             # (1, m)
        mx = jnp.max(logits, axis=1, keepdims=True)
        lse = jnp.log(jnp.sum(jnp.exp(logits - mx), axis=1, keepdims=True)) + mx
        logsm = logits - lse

        # --- single lane-dense store per step for each output ---
        pieces = [logsm, s_new]
        if pad_packed is not None:
            pieces.append(pad_packed)
        packed_ref[t] = jnp.concatenate(pieces, axis=1)          # (1, P), one unmasked store
        if pad_alpha is not None:
            alpha_ref[t] = jnp.concatenate([alpha, pad_alpha], axis=1)
        else:
            alpha_ref[t] = alpha

    # TODO(synk): nn.Dropout is applied to the log_softmax in the reference forward() but
    # its result is discarded, so it is a no-op and intentionally not implemented.


def prepare_params(params):
    """One-time re-layout into fused, MXU-friendly bf16 slabs (row-vector convention)."""
    bf16, f32 = jnp.bfloat16, jnp.float32
    m, n = params['W'].shape
    four_n = params['Uo'].shape[0]
    perm = np.concatenate([np.arange(0, four_n, 2), np.arange(1, four_n, 2)])
    # s-operand slab [Wa.T | Uz | Ur]: feeds the attention pre-projection and the z/r gates.
    w_s_all = jnp.concatenate([params['Wa'].T, params['Uz'], params['Ur']], axis=1).astype(bf16)
    # [y | ctx] slab, columns = [z|r gates (2n) | s_tilde (n) | deep output (4n, even|odd perm)]
    y_block = jnp.concatenate(
        [params['Wz'], params['Wr'], params['W'], params['Vo'].T[:, perm]], axis=1)
    c_block = jnp.concatenate(
        [params['Cz'], params['Cr'], params['C'], params['Co'].T[:, perm]], axis=1)
    w_yc = jnp.concatenate([y_block, c_block], axis=0).astype(bf16)    # (m+2n, 7n)
    return dict(
        w_s_all=w_s_all,                                 # (n, n'+2n)
        ua_t=params['Ua'].T.astype(bf16),                # (2n, n')
        va=params['Va'].reshape(1, -1).astype(f32),      # (1, n')  VPU operand: keep f32
        w_yc=w_yc,                                       # (m+2n, 7n)
        w_u_s=params['U'].astype(bf16),                  # (n, n)
        w_u_deep=params['Uo'].T[:, perm].astype(bf16),   # (n, 4n)
        wo_t=params['Wo'].T.astype(bf16),                # (2n, m)
    )


def attn_decoder_decode(y_rows, s0_row, encoder_outputs, prep):
    """Run T teacher-forced decode steps inside ONE grid-less pallas_call.

    y_rows: (T, m) embedded previous tokens, s0_row: (1, n), encoder_outputs: (L, 2n).
    Returns (log_softmax (T, m), hidden (T, n), attn_weights (T, L, 2n)); step t equals the
    t-th chained call of the PyTorch module forward() (including torch's in-place scaling of
    encoder_outputs inside get_c).
    """
    f32 = jnp.float32
    T, m = y_rows.shape
    n = s0_row.shape[1]
    L, two_n = encoder_outputs.shape
    P = _round_up(m + n, 128)     # lane-dense packed row
    PA = _round_up(two_n, 128)    # lane-dense alpha block

    vmem = pl.BlockSpec(memory_space=pltpu.MemorySpace.VMEM)
    packed, alpha = pl.pallas_call(
        _attn_decoder_kernel,
        out_shape=(jax.ShapeDtypeStruct((T, 1, P), f32),
                   jax.ShapeDtypeStruct((T, L, PA), f32)),
        in_specs=[vmem] * 10,
        out_specs=(vmem, vmem),
    )(y_rows.reshape(T, 1, m).astype(f32), s0_row.astype(f32),
      encoder_outputs.astype(f32),
      prep['w_s_all'], prep['ua_t'], prep['va'], prep['w_yc'],
      prep['w_u_s'], prep['w_u_deep'], prep['wo_t'])

    packed = packed.reshape(T, P)
    return packed[:, :m], packed[:, m:m + n], alpha[:, :, :two_n]


def attn_decoder_forward(output_col, hidden_col, encoder_outputs, prep):
    """Single module forward() step with the torch conventions:
    output_col (m,1), hidden_col (n,1), encoder_outputs (L,2n)
    -> (log_softmax (m,1), hidden (n,1), attn_weights (L,2n))."""
    m = output_col.shape[0]
    n = hidden_col.shape[0]
    logsm, s_new, alpha = attn_decoder_decode(
        output_col.reshape(1, m), hidden_col.reshape(1, n), encoder_outputs, prep)
    return logsm.reshape(m, 1), s_new.reshape(n, 1), alpha[0]


def init_params(key, hidden_size, output_size, max_length):
    n, m, np_ = hidden_size, output_size, max_length
    shapes = {
        'W': (m, n), 'Wz': (m, n), 'Wr': (m, n), 'Wo': (m, 2 * n),
        'U': (n, n), 'Uz': (n, n), 'Ur': (n, n), 'Uo': (4 * n, n),
        'C': (2 * n, n), 'Cz': (2 * n, n), 'Cr': (2 * n, n), 'Co': (4 * n, 2 * n),
        'Vo': (4 * n, m), 'Va': (np_, 1), 'Wa': (np_, n), 'Ua': (np_, 2 * n),
    }
    params = {}
    for i, name in enumerate(sorted(shapes)):
        params[name] = jax.random.uniform(jax.random.fold_in(key, i),
                                          shapes[name], jnp.float32)
    return params


def reference_forward_np(output_col, hidden_col, encoder_outputs, params):
    """Pure numpy (float64) transcription of the PyTorch forward pass (one step)."""
    P = {k: np.asarray(v, np.float64) for k, v in params.items()}
    y = np.asarray(output_col, np.float64)
    s = np.asarray(hidden_col, np.float64)
    h = np.asarray(encoder_outputs, np.float64)
    sig = lambda x: 1.0 / (1.0 + np.exp(-x))
    # attention (get_c)
    L = h.shape[0]
    e = np.zeros(L)
    for i in range(L):
        pre = np.tanh(P['Wa'] @ s + (P['Ua'] @ h[i]).reshape(-1, 1))
        e[i] = np.exp(P['Va'].T @ pre)[0, 0]
    e = e / e.sum()
    alpha = h * e[:, None]
    c = alpha.sum(axis=0).reshape(-1, 1)
    # decoder cell
    z = sig(P['Wz'].T @ y + P['Uz'].T @ s + P['Cz'].T @ c)
    r = sig(P['Wr'].T @ y + P['Ur'].T @ s + P['Cr'].T @ c)
    s_til = sig(P['W'].T @ y + P['U'].T @ (r * s) + P['C'].T @ c)
    s_new = (1 - z) * z * 0 + (1 - z) * s + z * s_til
    t_til = sig(P['Uo'] @ s_new + P['Vo'] @ y + P['Co'] @ c)
    t = np.maximum(t_til[0::2], t_til[1::2])
    logits = P['Wo'] @ t
    sm = np.exp(logits) / np.exp(logits).sum(axis=0, keepdims=True)
    return np.log(sm), s_new, alpha


if __name__ == "__main__":
    hidden_size = 32   # n
    output_size = 16   # m (vocab)
    seq_len = 8        # L (encoder outputs, each 2n wide)
    n_steps = 5        # T decode steps fused into one kernel launch

    key = jax.random.PRNGKey(0)
    kp, ky, ks, kh, kseq = jax.random.split(key, 5)
    params = init_params(kp, hidden_size, output_size, MAX_LENGTH)
    prep = prepare_params(params)   # one-time weight re-layout (NOT per forward call)

    output_col = jax.random.uniform(ky, (output_size, 1), jnp.float32)
    hidden_col = jax.random.uniform(ks, (hidden_size, 1), jnp.float32)
    encoder_outputs = jax.random.uniform(kh, (seq_len, 2 * hidden_size), jnp.float32)

    # ---- single forward() call (exact module semantics) ----
    log_softmax, new_hidden, attn_weights = attn_decoder_forward(
        output_col, hidden_col, encoder_outputs, prep)
    jax.block_until_ready((log_softmax, new_hidden, attn_weights))

    ref_logsm, ref_s, ref_alpha = reference_forward_np(
        output_col, hidden_col, encoder_outputs, params)
    np.testing.assert_allclose(np.asarray(log_softmax), ref_logsm, rtol=5e-2, atol=5e-2)
    np.testing.assert_allclose(np.asarray(new_hidden), ref_s, rtol=5e-2, atol=5e-2)
    np.testing.assert_allclose(np.asarray(attn_weights), ref_alpha, rtol=5e-2, atol=5e-2)

    # ---- T teacher-forced steps in ONE kernel launch (whole decode loop in-kernel) ----
    y_seq = jax.random.uniform(kseq, (n_steps, output_size), jnp.float32)
    logsm_seq, s_seq, alpha_seq = attn_decoder_decode(
        y_seq, hidden_col.reshape(1, hidden_size), encoder_outputs, prep)
    jax.block_until_ready((logsm_seq, s_seq, alpha_seq))

    # reference: chain forward() T times (torch scales encoder_outputs in place inside get_c)
    h_np = np.asarray(encoder_outputs, np.float64)
    s_np = np.asarray(hidden_col, np.float64)
    for t in range(n_steps):
        r_lsm, s_np, r_alpha = reference_forward_np(
            np.asarray(y_seq[t]).reshape(-1, 1), s_np, h_np, params)
        h_np = r_alpha
        np.testing.assert_allclose(np.asarray(logsm_seq[t]).reshape(-1, 1), r_lsm,
                                   rtol=5e-2, atol=5e-2)
        np.testing.assert_allclose(np.asarray(s_seq[t]).reshape(-1, 1), s_np,
                                   rtol=5e-2, atol=5e-2)
        np.testing.assert_allclose(np.asarray(alpha_seq[t]), r_alpha, rtol=5e-2, atol=5e-2)

    print("KERNEL_OK")
</pallas_src>

<mosaic_0001>
module attributes {stable_mosaic.version = 11 : i64} {
  func.func @_attn_decoder_kernel(%arg0: memref<1x1x16xf32, #tpu.memory_space<vmem>>, %arg1: memref<1x32xf32, #tpu.memory_space<vmem>>, %arg2: memref<8x64xf32, #tpu.memory_space<vmem>>, %arg3: memref<32x79xbf16, #tpu.memory_space<vmem>>, %arg4: memref<64x15xbf16, #tpu.memory_space<vmem>>, %arg5: memref<1x15xf32, #tpu.memory_space<vmem>>, %arg6: memref<80x224xbf16, #tpu.memory_space<vmem>>, %arg7: memref<32x32xbf16, #tpu.memory_space<vmem>>, %arg8: memref<32x128xbf16, #tpu.memory_space<vmem>>, %arg9: memref<64x16xbf16, #tpu.memory_space<vmem>>, %arg10: memref<1x1x128xf32, #tpu.memory_space<vmem>>, %arg11: memref<1x8x128xf32, #tpu.memory_space<vmem>>) attributes {dimension_semantics = [], scalar_prefetch = 0 : i64, scratch_operands = 0 : i64, tpu.core_type = #tpu.core_type<tc>} {
    %c0 = arith.constant 0 : index
    %c0_0 = arith.constant 0 : index
    %0 = vector.load %arg5[%c0, %c0_0] : memref<1x15xf32, #tpu.memory_space<vmem>>, vector<1x15xf32>
    %1 = vector.shape_cast %0 : vector<1x15xf32> to vector<1x15xf32>
    %2 = vector.broadcast %1 : vector<1x15xf32> to vector<8x15xf32>
    %cst = arith.constant 0.000000e+00 : f32
    %3 = vector.broadcast %cst : f32 to vector<1x80xf32>
    %cst_1 = arith.constant 0.000000e+00 : f32
    %4 = vector.broadcast %cst_1 : f32 to vector<8x64xf32>
    %c0_2 = arith.constant 0 : index
    %c0_3 = arith.constant 0 : index
    %5 = vector.load %arg1[%c0_2, %c0_3] : memref<1x32xf32, #tpu.memory_space<vmem>>, vector<1x32xf32>
    %c0_4 = arith.constant 0 : index
    %c0_5 = arith.constant 0 : index
    %6 = vector.load %arg2[%c0_4, %c0_5] : memref<8x64xf32, #tpu.memory_space<vmem>>, vector<8x64xf32>
    %7 = arith.truncf %6 : vector<8x64xf32> to vector<8x64xbf16>
    %c0_6 = arith.constant 0 : index
    %c0_7 = arith.constant 0 : index
    %8 = vector.load %arg4[%c0_6, %c0_7] : memref<64x15xbf16, #tpu.memory_space<vmem>>, vector<64x15xbf16>
    %cst_8 = arith.constant dense<0.000000e+00> : vector<8x15xf32>
    %9 = tpu.matmul %7, %8, %cst_8 {dimension_numbers = #tpu.dot_dimension_numbers<[1], [0], [0], [1], [0, 0, 1, 1], [], []>} : vector<8x64xbf16>, vector<64x15xbf16>, vector<8x15xf32> -> vector<8x15xf32>
    %c0_9 = arith.constant 0 : index
    %c0_10 = arith.constant 0 : index
    %c0_11 = arith.constant 0 : index
    %10 = vector.load %arg0[%c0_9, %c0_10, %c0_11] : memref<1x1x16xf32, #tpu.memory_space<vmem>>, vector<1x1x16xf32>
    %11 = vector.shape_cast %10 : vector<1x1x16xf32> to vector<1x16xf32>
    %12 = arith.truncf %5 : vector<1x32xf32> to vector<1x32xbf16>
    %c0_12 = arith.constant 0 : index
    %c0_13 = arith.constant 0 : index
    %13 = vector.load %arg3[%c0_12, %c0_13] : memref<32x79xbf16, #tpu.memory_space<vmem>>, vector<32x79xbf16>
    %cst_14 = arith.constant dense<0.000000e+00> : vector<1x79xf32>
    %14 = tpu.matmul %12, %13, %cst_14 {dimension_numbers = #tpu.dot_dimension_numbers<[1], [0], [0], [1], [0, 0, 1, 1], [], []>} : vector<1x32xbf16>, vector<32x79xbf16>, vector<1x79xf32> -> vector<1x79xf32>
    %15 = vector.extract_strided_slice %14 {offsets = [0, 0], sizes = [1, 15], strides = [1, 1]} : vector<1x79xf32> to vector<1x15xf32>
    %16 = vector.extract_strided_slice %14 {offsets = [0, 15], sizes = [1, 64], strides = [1, 1]} : vector<1x79xf32> to vector<1x64xf32>
    %17 = vector.broadcast %15 : vector<1x15xf32> to vector<8x15xf32>
    %18 = arith.addf %17, %9 : vector<8x15xf32>
    %19 = math.tanh %18 : vector<8x15xf32>
    %20 = arith.mulf %19, %2 : vector<8x15xf32>
    %cst_15 = arith.constant dense<0.000000e+00> : vector<8xf32>
    %21 = vector.multi_reduction <add>, %20, %cst_15 [1] : vector<8x15xf32> to vector<8xf32>
    %22 = vector.shape_cast %21 : vector<8xf32> to vector<8x1xf32>
    %cst_16 = arith.constant dense<0xFF800000> : vector<1xf32>
    %23 = vector.multi_reduction <maximumf>, %22, %cst_16 [0] : vector<8x1xf32> to vector<1xf32>
    %24 = vector.shape_cast %23 : vector<1xf32> to vector<1x1xf32>
    %25 = vector.broadcast %24 : vector<1x1xf32> to vector<8x1xf32>
    %26 = arith.subf %22, %25 : vector<8x1xf32>
    %27 = math.exp %26 : vector<8x1xf32>
    %cst_17 = arith.constant dense<0.000000e+00> : vector<1xf32>
    %28 = vector.multi_reduction <add>, %27, %cst_17 [0] : vector<8x1xf32> to vector<1xf32>
    %29 = vector.shape_cast %28 : vector<1xf32> to vector<1x1xf32>
    %30 = vector.broadcast %29 : vector<1x1xf32> to vector<8x1xf32>
    %31 = arith.divf %27, %30 : vector<8x1xf32>
    %32 = vector.broadcast %31 : vector<8x1xf32> to vector<8x64xf32>
    %33 = arith.mulf %6, %32 : vector<8x64xf32>
    %cst_18 = arith.constant dense<0.000000e+00> : vector<64xf32>
    %34 = vector.multi_reduction <add>, %33, %cst_18 [0] : vector<8x64xf32> to vector<64xf32>
    %35 = vector.shape_cast %34 : vector<64xf32> to vector<1x64xf32>
    %36 = tpu.concatenate %11, %35 in 1 : vector<1x16xf32>, vector<1x64xf32> -> vector<1x80xf32>
    %37 = arith.truncf %36 : vector<1x80xf32> to vector<1x80xbf16>
    %c0_19 = arith.constant 0 : index
    %c0_20 = arith.constant 0 : index
    %38 = vector.load %arg6[%c0_19, %c0_20] : memref<80x224xbf16, #tpu.memory_space<vmem>>, vector<80x224xbf16>
    %cst_21 = arith.constant dense<0.000000e+00> : vector<1x224xf32>
    %39 = tpu.matmul %37, %38, %cst_21 {dimension_numbers = #tpu.dot_dimension_numbers<[1], [0], [0], [1], [0, 0, 1, 1], [], []>} : vector<1x80xbf16>, vector<80x224xbf16>, vector<1x224xf32> -> vector<1x224xf32>
    %40 = vector.extract_strided_slice %39 {offsets = [0, 0], sizes = [1, 64], strides = [1, 1]} : vector<1x224xf32> to vector<1x64xf32>
    %41 = vector.extract_strided_slice %39 {offsets = [0, 64], sizes = [1, 32], strides = [1, 1]} : vector<1x224xf32> to vector<1x32xf32>
    %42 = vector.extract_strided_slice %39 {offsets = [0, 96], sizes = [1, 128], strides = [1, 1]} : vector<1x224xf32> to vector<1x128xf32>
    %43 = arith.addf %40, %16 : vector<1x64xf32>
    %cst_22 = arith.constant 0.000000e+00 : f32
    %44 = vector.broadcast %cst_22 : f32 to vector<1x64xf32>
    %45 = arith.subf %44, %43 : vector<1x64xf32>
    %46 = math.exp %45 : vector<1x64xf32>
    %cst_23 = arith.constant 1.000000e+00 : f32
    %47 = vector.broadcast %cst_23 : f32 to vector<1x64xf32>
    %48 = arith.addf %47, %46 : vector<1x64xf32>
    %cst_24 = arith.constant 1.000000e+00 : f32
    %49 = vector.broadcast %cst_24 : f32 to vector<1x64xf32>
    %50 = arith.divf %49, %48 : vector<1x64xf32>
    %51 = vector.extract_strided_slice %50 {offsets = [0, 0], sizes = [1, 32], strides = [1, 1]} : vector<1x64xf32> to vector<1x32xf32>
    %52 = vector.extract_strided_slice %50 {offsets = [0, 32], sizes = [1, 32], strides = [1, 1]} : vector<1x64xf32> to vector<1x32xf32>
    %53 = arith.mulf %52, %5 : vector<1x32xf32>
    %54 = arith.truncf %53 : vector<1x32xf32> to vector<1x32xbf16>
    %c0_25 = arith.constant 0 : index
    %c0_26 = arith.constant 0 : index
    %55 = vector.load %arg7[%c0_25, %c0_26] : memref<32x32xbf16, #tpu.memory_space<vmem>>, vector<32x32xbf16>
    %cst_27 = arith.constant dense<0.000000e+00> : vector<1x32xf32>
    %56 = tpu.matmul %54, %55, %cst_27 {dimension_numbers = #tpu.dot_dimension_numbers<[1], [0], [0], [1], [0, 0, 1, 1], [], []>} : vector<1x32xbf16>, vector<32x32xbf16>, vector<1x32xf32> -> vector<1x32xf32>
    %57 = arith.addf %41, %56 : vector<1x32xf32>
    %cst_28 = arith.constant 0.000000e+00 : f32
    %58 = vector.broadcast %cst_28 : f32 to vector<1x32xf32>
    %59 = arith.subf %58, %57 : vector<1x32xf32>
    %60 = math.exp %59 : vector<1x32xf32>
    %cst_29 = arith.constant 1.000000e+00 : f32
    %61 = vector.broadcast %cst_29 : f32 to vector<1x32xf32>
    %62 = arith.addf %61, %60 : vector<1x32xf32>
    %cst_30 = arith.constant 1.000000e+00 : f32
    %63 = vector.broadcast %cst_30 : f32 to vector<1x32xf32>
    %64 = arith.divf %63, %62 : vector<1x32xf32>
    %cst_31 = arith.constant 1.000000e+00 : f32
    %65 = vector.broadcast %cst_31 : f32 to vector<1x32xf32>
    %66 = arith.subf %65, %51 : vector<1x32xf32>
    %67 = arith.mulf %66, %5 : vector<1x32xf32>
    %68 = arith.mulf %51, %64 : vector<1x32xf32>
    %69 = arith.addf %67, %68 : vector<1x32xf32>
    %70 = arith.truncf %69 : vector<1x32xf32> to vector<1x32xbf16>
    %c0_32 = arith.constant 0 : index
    %c0_33 = arith.constant 0 : index
    %71 = vector.load %arg8[%c0_32, %c0_33] : memref<32x128xbf16, #tpu.memory_space<vmem>>, vector<32x128xbf16>
    %cst_34 = arith.constant dense<0.000000e+00> : vector<1x128xf32>
    %72 = tpu.matmul %70, %71, %cst_34 {dimension_numbers = #tpu.dot_dimension_numbers<[1], [0], [0], [1], [0, 0, 1, 1], [], []>} : vector<1x32xbf16>, vector<32x128xbf16>, vector<1x128xf32> -> vector<1x128xf32>
    %73 = arith.addf %42, %72 : vector<1x128xf32>
    %cst_35 = arith.constant 0.000000e+00 : f32
    %74 = vector.broadcast %cst_35 : f32 to vector<1x128xf32>
    %75 = arith.subf %74, %73 : vector<1x128xf32>
    %76 = math.exp %75 : vector<1x128xf32>
    %cst_36 = arith.constant 1.000000e+00 : f32
    %77 = vector.broadcast %cst_36 : f32 to vector<1x128xf32>
    %78 = arith.addf %77, %76 : vector<1x128xf32>
    %cst_37 = arith.constant 1.000000e+00 : f32
    %79 = vector.broadcast %cst_37 : f32 to vector<1x128xf32>
    %80 = arith.divf %79, %78 : vector<1x128xf32>
    %81 = vector.extract_strided_slice %80 {offsets = [0, 0], sizes = [1, 64], strides = [1, 1]} : vector<1x128xf32> to vector<1x64xf32>
    %82 = vector.extract_strided_slice %80 {offsets = [0, 64], sizes = [1, 64], strides = [1, 1]} : vector<1x128xf32> to vector<1x64xf32>
    %83 = arith.maximumf %81, %82 : vector<1x64xf32>
    %84 = arith.truncf %83 : vector<1x64xf32> to vector<1x64xbf16>
    %c0_38 = arith.constant 0 : index
    %c0_39 = arith.constant 0 : index
    %85 = vector.load %arg9[%c0_38, %c0_39] : memref<64x16xbf16, #tpu.memory_space<vmem>>, vector<64x16xbf16>
    %cst_40 = arith.constant dense<0.000000e+00> : vector<1x16xf32>
    %86 = tpu.matmul %84, %85, %cst_40 {dimension_numbers = #tpu.dot_dimension_numbers<[1], [0], [0], [1], [0, 0, 1, 1], [], []>} : vector<1x64xbf16>, vector<64x16xbf16>, vector<1x16xf32> -> vector<1x16xf32>
    %cst_41 = arith.constant dense<0xFF800000> : vector<1xf32>
    %87 = vector.multi_reduction <maximumf>, %86, %cst_41 [1] : vector<1x16xf32> to vector<1xf32>
    %88 = vector.shape_cast %87 : vector<1xf32> to vector<1x1xf32>
    %89 = vector.broadcast %88 : vector<1x1xf32> to vector<1x16xf32>
    %90 = arith.subf %86, %89 : vector<1x16xf32>
    %91 = math.exp %90 : vector<1x16xf32>
    %cst_42 = arith.constant dense<0.000000e+00> : vector<1xf32>
    %92 = vector.multi_reduction <add>, %91, %cst_42 [1] : vector<1x16xf32> to vector<1xf32>
    %93 = vector.shape_cast %92 : vector<1xf32> to vector<1x1xf32>
    %94 = math.log %93 : vector<1x1xf32>
    %95 = arith.addf %94, %88 : vector<1x1xf32>
    %96 = vector.broadcast %95 : vector<1x1xf32> to vector<1x16xf32>
    %97 = arith.subf %86, %96 : vector<1x16xf32>
    %98 = tpu.concatenate %97, %69, %3 in 1 : vector<1x16xf32>, vector<1x32xf32>, vector<1x80xf32> -> vector<1x128xf32>
    %c0_43 = arith.constant 0 : index
    %c0_44 = arith.constant 0 : index
    %c0_45 = arith.constant 0 : index
    %99 = vector.load %arg10[%c0_43, %c0_44, %c0_45] : memref<1x1x128xf32, #tpu.memory_space<vmem>>, vector<1x1x128xf32>
    %100 = vector.shape_cast %99 : vector<1x1x128xf32> to vector<1x128xf32>
    %101 = vector.shape_cast %98 : vector<1x128xf32> to vector<1x1x128xf32>
    tpu.vector_store %arg10[%c0_43, %c0_44, %c0_45], %101 {strides = array<i32>} : memref<1x1x128xf32, #tpu.memory_space<vmem>>, vector<1x1x128xf32>,
    %102 = tpu.concatenate %33, %4 in 1 : vector<8x64xf32>, vector<8x64xf32> -> vector<8x128xf32>
    %c0_46 = arith.constant 0 : index
    %c0_47 = arith.constant 0 : index
    %c0_48 = arith.constant 0 : index
    %103 = vector.load %arg11[%c0_46, %c0_47, %c0_48] : memref<1x8x128xf32, #tpu.memory_space<vmem>>, vector<1x8x128xf32>
    %104 = vector.shape_cast %103 : vector<1x8x128xf32> to vector<8x128xf32>
    %105 = vector.shape_cast %102 : vector<8x128xf32> to vector<1x8x128xf32>
    tpu.vector_store %arg11[%c0_46, %c0_47, %c0_48], %105 {strides = array<i32>} : memref<1x8x128xf32, #tpu.memory_space<vmem>>, vector<1x8x128xf32>,
    return
  }
}

</mosaic_0001>

<llo_original>
// kernel: tpu_custom_call.1
$region0: #{tpu_custom_call.1}
  #allocation0 [shape = 'u32[]', space=smem, size = 0x4, offset = 0x4, fixed_abs, tag = 'smem constant byte address 0x4 - core index']
  #allocation1 [shape = 'u32[72,128]{1,0:T(1,128)}', space=vmem, size = 0x9000, scoped, tag = 'internal scratch']
  %s0 = inlined_call_operand.vmem [shape: f32[1,1,16], index: 0, kind: input, shape index: {}]
  %s1 = inlined_call_operand.vmem [shape: f32[1,32], index: 1, kind: input, shape index: {}]
  %s2 = inlined_call_operand.vmem [shape: f32[8,64], index: 2, kind: input, shape index: {}]
  %s3 = inlined_call_operand.vmem [shape: bf16[32,79], index: 3, kind: input, shape index: {}]
  %s4 = inlined_call_operand.vmem [shape: bf16[64,15], index: 4, kind: input, shape index: {}]
  %s5 = inlined_call_operand.vmem [shape: f32[1,15], index: 5, kind: input, shape index: {}]
  %s6 = inlined_call_operand.hbm [shape: bf16[80,224], index: 6, kind: input, shape index: {}]
  %s7 = inlined_call_operand.vmem [shape: bf16[32,32], index: 7, kind: input, shape index: {}]
  %s8 = inlined_call_operand.vmem [shape: bf16[32,128], index: 8, kind: input, shape index: {}]
  %s9 = inlined_call_operand.vmem [shape: bf16[64,16], index: 9, kind: input, shape index: {}]
  %s10 = inlined_call_operand.hbm [shape: f32[1,1,128], index: 10, kind: output, shape index: {0}]
  %s11 = inlined_call_operand.hbm [shape: f32[1,8,128], index: 11, kind: output, shape index: {1}]
  %12 = xla_tuple %s10, %s11
  %s13 = sld [smem:[#allocation0]]
  $region62: #{tpu_custom_call.1} parent=0
    _
  %s15 = ssub.s32 1, %s13
  %s16 = scalar_select 0, %s15, %s13
  $region1: #{tpu_custom_call.1} parent=0
    #allocation2 [shape = 'u8[40960]{0}', space=vmem, size = 0xa000, scoped, tag = 'input window, operand 6, single buffered']
    #allocation3 [shape = 's32[1]{0}', space=sflag, size = 0x4, scoped, tag = 'scoped memory for tpu_custom_call.1']
    #allocation4 [shape = 's32[1]{0}', space=sflag, size = 0x4, scoped, tag = 'scoped memory for tpu_custom_call.1']
    #allocation5 [shape = 'u8[512]{0}', space=vmem, size = 0x400, scoped, tag = 'output window, operand 0, single buffered']
    #allocation6 [shape = 'u8[4096]{0}', space=vmem, size = 0x1000, scoped, tag = 'output window, operand 1, single buffered']
    #allocation7 [shape = 's32[1]{0}', space=sflag, size = 0x4, scoped, tag = 'scoped memory for tpu_custom_call.1']
    %17 = vsyncpa [#allocation3], 0
    %18 = vsyncpa [#allocation4], 0
    %19 = vsyncpa [#allocation7], 0
    // Predicated region
    $region2: #{tpu_custom_call.1} parent=1 // pred_check
      _
    $region3: #{tpu_custom_call.1} parent=1 // pred_check_branch
      %21 = sbr.rel (0) target = $region5
    $region4: #{tpu_custom_call.1} parent=1 // pred_region
      _
    $region5: #{tpu_custom_call.1} parent=1 // pred_fallthru
      _
    // Predicated region
    $region6: #{tpu_custom_call.1} parent=1 // pred_check
      _
    $region7: #{tpu_custom_call.1} parent=1 // pred_check_branch
      %23 = sbr.rel (0) target = $region9
    $region8: #{tpu_custom_call.1} parent=1 // pred_region
      _
    $region9: #{tpu_custom_call.1} parent=1 // pred_fallthru
      _
    // Predicated region
    $region10: #{tpu_custom_call.1} parent=1 // pred_check
      _
    $region11: #{tpu_custom_call.1} parent=1 // pred_check_branch
      %25 = sbr.rel (0) target = $region13
    $region12: #{tpu_custom_call.1} parent=1 // pred_region
      _
    $region13: #{tpu_custom_call.1} parent=1 // pred_fallthru
      _
    // Predicated region
    $region14: #{tpu_custom_call.1} parent=1 // pred_check
      _
    $region15: #{tpu_custom_call.1} parent=1 // pred_check_branch
      %27 = sbr.rel (0) target = $region17
    $region16: #{tpu_custom_call.1} parent=1 // pred_region
      _
    $region17: #{tpu_custom_call.1} parent=1 // pred_fallthru
      _
    // Predicated region
    $region18: #{tpu_custom_call.1} parent=1 // pred_check
      _
    $region19: #{tpu_custom_call.1} parent=1 // pred_check_branch
      %29 = sbr.rel (0) target = $region21
    $region20: #{tpu_custom_call.1} parent=1 // pred_region
      _
    $region21: #{tpu_custom_call.1} parent=1 // pred_fallthru
      _
    // Predicated region
    $region22: #{tpu_custom_call.1} parent=1 // pred_check
      _
    $region23: #{tpu_custom_call.1} parent=1 // pred_check_branch
      %31 = sbr.rel (0) target = $region25
    $region24: #{tpu_custom_call.1} parent=1 // pred_region
      _
    $region25: #{tpu_custom_call.1} parent=1 // pred_fallthru
      _
    // Predicated region
    $region26: #{tpu_custom_call.1} parent=1 // pred_check
      _
    $region27: #{tpu_custom_call.1} parent=1 // pred_check_branch
      %33 = sbr.rel (0) target = $region29
    $region28: #{tpu_custom_call.1} parent=1 // pred_region
      %35 = vsyncadd [#allocation3], 0
      %s36 = sshll.u32 %s6, 4
      %s37 = int_to_ptr.hbm [resolvable:$true] %s36
      %s38 = sshll.u32 [#allocation2], 4
      %s39 = int_to_ptr.vmem [resolvable:$true] %s38
      %44 = dma.hbm_to_vmem [thread:$0]  %s37, 1280, %s39, [#allocation3], 128, 128, 8
    $region29: #{tpu_custom_call.1} parent=1 // pred_fallthru
      _
    // Predicated region
    $region30: #{tpu_custom_call.1} parent=1 // pred_check
      _
    $region31: #{tpu_custom_call.1} parent=1 // pred_check_branch
      %46 = sbr.rel (0) target = $region33
    $region32: #{tpu_custom_call.1} parent=1 // pred_region
      _
    $region33: #{tpu_custom_call.1} parent=1 // pred_fallthru
      _
    // Predicated region
    $region34: #{tpu_custom_call.1} parent=1 // pred_check
      _
    $region35: #{tpu_custom_call.1} parent=1 // pred_check_branch
      %48 = sbr.rel (0) target = $region37
    $region36: #{tpu_custom_call.1} parent=1 // pred_region
      _
    $region37: #{tpu_custom_call.1} parent=1 // pred_fallthru
      _
    // Predicated region
    $region38: #{tpu_custom_call.1} parent=1 // pred_check
      _
    $region39: #{tpu_custom_call.1} parent=1 // pred_check_branch
      %50 = sbr.rel (0) target = $region41
    $region40: #{tpu_custom_call.1} parent=1 // pred_region
      _
    $region41: #{tpu_custom_call.1} parent=1 // pred_fallthru
      _
    // Predicated region
    $region42: #{tpu_custom_call.1} parent=1 // pred_check
      _
    $region43: #{tpu_custom_call.1} parent=1 // pred_check_branch
      %52 = sbr.rel (0) target = $region45
    $region44: #{tpu_custom_call.1} parent=1 // pred_region
      %54 = dma.done [#allocation3], 1280
    $region45: #{tpu_custom_call.1} parent=1 // pred_fallthru
      _
    %v56 = vld [vmem:[%s5] sm:$0x1]
    %v58 = vperm.slane %v56, 0
    %v60 = vld [vmem:[%s1] sm:$0x1]
    %v61 = vld [vmem:[%s2] sm:$0xff]
    %v62 = vpack.c.bf16 %v61, %v61
    %v63 = vld [vmem:[%s4] sm:$0xf]
    %v64 = vld [vmem:[%s4 + $0x4] sm:$0xf]
    %v65 = vld [vmem:[%s4 + $0x8] sm:$0xf]
    %v66 = vld [vmem:[%s4 + $0xc] sm:$0xf]
    %v67 = vld [vmem:[%s4 + $0x10] sm:$0xf]
    %v68 = vld [vmem:[%s4 + $0x14] sm:$0xf]
    %v69 = vld [vmem:[%s4 + $0x18] sm:$0xf]
    %v70 = vld [vmem:[%s4 + $0x1c] sm:$0xf]
    %v79 = vunpack.c.l.b16 %v63
    %v80 = vunpack.c.l.b16 %v64
    %v81 = vunpack.c.l.b16 %v65
    %v82 = vunpack.c.l.b16 %v66
    %v83 = vunpack.c.l.b16 %v67
    %v84 = vunpack.c.l.b16 %v68
    %v85 = vunpack.c.l.b16 %v69
    %v86 = vunpack.c.l.b16 %v70
    %v87 = vpack.c.b16 %v80, %v79
    %v88 = vpack.c.b16 %v82, %v81
    %v89 = vpack.c.b16 %v84, %v83
    %v90 = vpack.c.b16 %v86, %v85
    %vm95 = vcmask 523264
    %v97 = vsel %vm95, %v62, 0
    %99 = vmatpush.bf16.msra.mxu0 0
    %100 = vmatpush.bf16.msra.mxu0 0
    %101 = vmatpush.bf16.msra.mxu0 0
    %102 = vmatpush.bf16.msra.mxu0 0
    %103 = vmatpush.bf16.msra.mxu0 %v90
    %104 = vmatpush.bf16.msra.mxu0 %v89
    %105 = vmatpush.bf16.msra.mxu0 %v88
    %106 = vmatpush.bf16.msra.mxu0 %v87
    %107 = vmatmul.bf16.gmra.mxu0 %v97
    %v108 = vpop.f32.mrf.mxu0
    %v109 = vadd.f32 0.0, %v108
    %v110 = vpop.f32.mrf.mxu0
    %111 = vdwg.mxu0
    %v112 = vld [vmem:[%s0] sm:$0x1]
    %v113 = vpack.c.bf16 %v60, %v60
    %v114 = vld [vmem:[%s3] sm:$0xf]
    %v115 = vld [vmem:[%s3 + $0x4] sm:$0xf]
    %v116 = vld [vmem:[%s3 + $0x8] sm:$0xf]
    %v117 = vld [vmem:[%s3 + $0xc] sm:$0xf]
    %v122 = vunpack.c.l.b16 %v114
    %v123 = vunpack.c.l.b16 %v115
    %v124 = vunpack.c.l.b16 %v116
    %v125 = vunpack.c.l.b16 %v117
    %v126 = vpack.c.b16 %v123, %v122
    %v127 = vpack.c.b16 %v125, %v124
    %vm130 = vcmask 261120
    %v132 = vsel %vm130, %v113, 0
    %134 = vmatpush.bf16.msra.mxu0 0
    %135 = vmatpush.bf16.msra.mxu0 0
    %136 = vmatpush.bf16.msra.mxu0 0
    %137 = vmatpush.bf16.msra.mxu0 0
    %138 = vmatpush.bf16.msra.mxu0 0
    %139 = vmatpush.bf16.msra.mxu0 0
    %140 = vmatpush.bf16.msra.mxu0 %v127
    %141 = vmatpush.bf16.msra.mxu0 %v126
    %142 = vmatmul.bf16.gmra.mxu0 %v132
    %v143 = vpop.f32.mrf.mxu0
    %v144 = vadd.f32 0.0, %v143
    %v145 = vpop.f32.mrf.mxu0
    %146 = vdwg.mxu0
    %v147 = vperm.slane %v144, 0
    %v148 = vadd.f32 %v147, %v109
    %v149 = vtanh.pop %v148
    %v150 = vmul.f32 %v149, %v58
    %vm151 = vcmask 121856
    %v152 = vsel %vm151, %v150, 0.0
    %153 = vadd.xlane.f32.xlu0 %v152
    %v154 = vpop.xlane.xlu0 %153
    %v155 = vrot.slane %v154, 4
    %v156 = vmax.f32 %v154, %v155
    %v157 = vrot.slane %v156, 2
    %v158 = vmax.f32 %v156, %v157
    %v159 = vrot.slane %v158, 1
    %v160 = vmax.f32 %v158, %v159
    %v161 = vsub.f32 %v154, %v160
    %v162 = vmul.f32 %v161, 1.442695
    %v163 = vpow.pop %v162
    %v164 = vrot.slane %v163, 4
    %v165 = vadd.f32 %v163, %v164
    %v166 = vrot.slane %v165, 2
    %v167 = vadd.f32 %v165, %v166
    %v168 = vrot.slane %v167, 1
    %v169 = vadd.f32 %v167, %v168
    %v170 = vrcp.pop %v169
    %v171 = vmul.f32 %v169, %v170
    %v172 = vsub.f32 1.0, %v171
    %v173 = vmul.f32 %v170, %v172
    %v174 = vadd.f32 %v170, %v173
    %vm175 = vweird.f32 %v169
    %vm176 = vweird.f32 %v170
    %vm177 = vmor %vm175, %vm176
    %v178 = vsel %vm177, %v170, %v174
    %v179 = vand.u32 2147483647, %v169
    %vm180 = vcmp.eq.f32.partialorder %v179, 8.507059e+37
    %v181 = vand.u32 %v169, 2147483648
    %v182 = vor.u32 1.1754944e-38, %v181
    %v183 = vsel %vm180, %v182, %v178
    %v184 = vmul.f32 %v163, %v183
    %v185 = vmul.f32 %v61, %v184
    %v186 = vsel %vm95, %v185, 0.0
    %v187 = vrot.slane %v186, 4
    %v188 = vadd.f32 %v186, %v187
    %v189 = vrot.slane %v188, 2
    %v190 = vadd.f32 %v188, %v189
    %v191 = vrot.slane %v190, 1
    %v192 = vadd.f32 %v190, %v191
    %194 = vrot.lane.b32.xlu0 %v192, 16
    %v195 = vpop.permute.xlu0 %194
    %vm197 = vcmask 130048
    %v198 = vsel %vm197, %v112, %v195
    %v199 = vpack.c.bf16 %v198, %v198
    %v200 = vld [vmem:[#allocation2] sm:$0xff]
    %v201 = vld [vmem:[#allocation2 + $0x8] sm:$0xff]
    %v202 = vld [vmem:[#allocation2 + $0x10] sm:$0xff]
    %v203 = vld [vmem:[#allocation2 + $0x18] sm:$0xff]
    %v204 = vld [vmem:[#allocation2 + $0x20] sm:$0xff]
    %v205 = vld [vmem:[#allocation2 + $0x28] sm:$0xff]
    %v206 = vld [vmem:[#allocation2 + $0x30] sm:$0xff]
    %v207 = vld [vmem:[#allocation2 + $0x38] sm:$0xff]
    %v208 = vld [vmem:[#allocation2 + $0x40] sm:$0xff]
    %v209 = vld [vmem:[#allocation2 + $0x48] sm:$0xff]
    %v220 = vunpack.c.l.b16 %v200
    %v221 = vunpack.c.h.b16 %v200
    %v222 = vunpack.c.l.b16 %v201
    %v223 = vunpack.c.h.b16 %v201
    %v224 = vunpack.c.l.b16 %v202
    %v225 = vunpack.c.h.b16 %v202
    %v226 = vunpack.c.l.b16 %v203
    %v227 = vunpack.c.h.b16 %v203
    %v228 = vunpack.c.l.b16 %v204
    %v229 = vunpack.c.h.b16 %v204
    %v230 = vunpack.c.l.b16 %v205
    %v231 = vunpack.c.h.b16 %v205
    %v232 = vunpack.c.l.b16 %v206
    %v233 = vunpack.c.h.b16 %v206
    %v234 = vunpack.c.l.b16 %v207
    %v235 = vunpack.c.h.b16 %v207
    %v236 = vunpack.c.l.b16 %v208
    %v237 = vunpack.c.h.b16 %v208
    %v238 = vunpack.c.l.b16 %v209
    %v239 = vunpack.c.h.b16 %v209
    %v240 = vpack.c.b16 %v222, %v220
    %v241 = vpack.c.b16 %v223, %v221
    %v242 = vpack.c.b16 %v226, %v224
    %v243 = vpack.c.b16 %v227, %v225
    %v244 = vpack.c.b16 %v230, %v228
    %v245 = vpack.c.b16 %v231, %v229
    %v246 = vpack.c.b16 %v234, %v232
    %v247 = vpack.c.b16 %v235, %v233
    %v248 = vpack.c.b16 %v238, %v236
    %v249 = vpack.c.b16 %v239, %v237
    %vm260 = vcmask 654336
    %v262 = vsel %vm260, %v199, 0
    %264 = vmatpush.bf16.msra.mxu0 0
    %265 = vmatpush.bf16.msra.mxu0 0
    %266 = vmatpush.bf16.msra.mxu0 0
    %267 = vmatpush.bf16.msra.mxu0 %v248
    %268 = vmatpush.bf16.msra.mxu0 %v246
    %269 = vmatpush.bf16.msra.mxu0 %v244
    %270 = vmatpush.bf16.msra.mxu0 %v242
    %271 = vmatpush.bf16.msra.mxu0 %v240
    %272 = vmatmul.bf16.gmra.mxu0 %v262
    %v273 = vpop.f32.mrf.mxu0
    %v274 = vadd.f32 0.0, %v273
    %v275 = vpop.f32.mrf.mxu0
    %276 = vdwg.mxu0
    %277 = vmatpush.bf16.msra.mxu0 0
    %278 = vmatpush.bf16.msra.mxu0 0
    %279 = vmatpush.bf16.msra.mxu0 0
    %280 = vmatpush.bf16.msra.mxu0 %v249
    %281 = vmatpush.bf16.msra.mxu0 %v247
    %282 = vmatpush.bf16.msra.mxu0 %v245
    %283 = vmatpush.bf16.msra.mxu0 %v243
    %284 = vmatpush.bf16.msra.mxu0 %v241
    %285 = vmatmul.bf16.gmra.mxu0 %v262
    %v286 = vpop.f32.mrf.mxu0
    %v287 = vadd.f32 0.0, %v286
    %v288 = vpop.f32.mrf.mxu0
    %289 = vdwg.mxu0
    %291 = vrot.lane.b32.xlu0 %v144, 113
    %v292 = vpop.permute.xlu0 %291
    %v294 = vadd.f32 %v274, %v292
    %v295 = vsub.f32 0.0, %v294
    %v296 = vmul.f32 %v295, 1.442695
    %v297 = vpow.pop %v296
    %v298 = vadd.f32 %v297, 1.0
    %v299 = vrcp.pop %v298
    %v300 = vmul.f32 %v298, %v299
    %v301 = vsub.f32 1.0, %v300
    %v302 = vmul.f32 %v299, %v301
    %v303 = vadd.f32 %v299, %v302
    %vm304 = vweird.f32 %v298
    %vm305 = vweird.f32 %v299
    %vm306 = vmor %vm304, %vm305
    %v307 = vsel %vm306, %v299, %v303
    %v308 = vand.u32 2147483647, %v298
    %vm309 = vcmp.eq.f32.partialorder %v308, 8.507059e+37
    %v310 = vand.u32 %v298, 2147483648
    %v311 = vor.u32 1.1754944e-38, %v310
    %v312 = vsel %vm309, %v311, %v307
    %v313 = vmul.f32 1.0, %v312
    %v315 = vperm.slane %v60, 0
    %316 = vrot.lane.b32.xlu0 %v315, 32
    %v317 = vpop.permute.xlu0 %316
    %v319 = vmul.f32 %v313, %v317
    %v320 = vpack.c.bf16 %v319, %v319
    %v321 = vld [vmem:[%s7] sm:$0xf]
    %v322 = vld [vmem:[%s7 + $0x4] sm:$0xf]
    %v323 = vld [vmem:[%s7 + $0x8] sm:$0xf]
    %v324 = vld [vmem:[%s7 + $0xc] sm:$0xf]
    %326 = vrot.lane.b32.xlu0 %v320, 96
    %v327 = vpop.permute.xlu0 %326
    %v332 = vunpack.c.l.b16 %v321
    %v333 = vunpack.c.l.b16 %v322
    %v334 = vunpack.c.l.b16 %v323
    %v335 = vunpack.c.l.b16 %v324
    %v336 = vpack.c.b16 %v333, %v332
    %v337 = vpack.c.b16 %v335, %v334
    %v341 = vsel %vm130, %v327, 0
    %343 = vmatpush.bf16.msra.mxu0 0
    %344 = vmatpush.bf16.msra.mxu0 0
    %345 = vmatpush.bf16.msra.mxu0 0
    %346 = vmatpush.bf16.msra.mxu0 0
    %347 = vmatpush.bf16.msra.mxu0 0
    %348 = vmatpush.bf16.msra.mxu0 0
    %349 = vmatpush.bf16.msra.mxu0 %v337
    %350 = vmatpush.bf16.msra.mxu0 %v336
    %351 = vmatmul.bf16.gmra.mxu0 %v341
    %v352 = vpop.f32.mrf.mxu0
    %v353 = vadd.f32 0.0, %v352
    %v354 = vpop.f32.mrf.mxu0
    %355 = vdwg.mxu0
    %357 = vrot.lane.b32.xlu0 %v353, 64
    %v358 = vpop.permute.xlu0 %357
    %v360 = vadd.f32 %v274, %v358
    %v361 = vsub.f32 0.0, %v360
    %v362 = vmul.f32 %v361, 1.442695
    %v363 = vpow.pop %v362
    %v364 = vadd.f32 %v363, 1.0
    %v365 = vrcp.pop %v364
    %v366 = vmul.f32 %v364, %v365
    %v367 = vsub.f32 1.0, %v366
    %v368 = vmul.f32 %v365, %v367
    %v369 = vadd.f32 %v365, %v368
    %vm370 = vweird.f32 %v364
    %vm371 = vweird.f32 %v365
    %vm372 = vmor %vm370, %vm371
    %v373 = vsel %vm372, %v365, %v369
    %v374 = vand.u32 2147483647, %v364
    %vm375 = vcmp.eq.f32.partialorder %v374, 8.507059e+37
    %v376 = vand.u32 %v364, 2147483648
    %v377 = vor.u32 1.1754944e-38, %v376
    %v378 = vsel %vm375, %v377, %v373
    %v379 = vmul.f32 1.0, %v378
    %v380 = vsub.f32 1.0, %v313
    %v381 = vmul.f32 %v380, %v60
    %383 = vrot.lane.b32.xlu0 %v379, 64
    %v384 = vpop.permute.xlu0 %383
    %v386 = vmul.f32 %v313, %v384
    %v387 = vadd.f32 %v381, %v386
    %v388 = vpack.c.bf16 %v387, %v387
    %v389 = vld [vmem:[%s8] sm:$0xf]
    %v390 = vld [vmem:[%s8 + $0x4] sm:$0xf]
    %v391 = vld [vmem:[%s8 + $0x8] sm:$0xf]
    %v392 = vld [vmem:[%s8 + $0xc] sm:$0xf]
    %v397 = vunpack.c.l.b16 %v389
    %v398 = vunpack.c.l.b16 %v390
    %v399 = vunpack.c.l.b16 %v391
    %v400 = vunpack.c.l.b16 %v392
    %v401 = vpack.c.b16 %v398, %v397
    %v402 = vpack.c.b16 %v400, %v399
    %v406 = vsel %vm130, %v388, 0
    %408 = vmatpush.bf16.msra.mxu0 0
    %409 = vmatpush.bf16.msra.mxu0 0
    %410 = vmatpush.bf16.msra.mxu0 0
    %411 = vmatpush.bf16.msra.mxu0 0
    %412 = vmatpush.bf16.msra.mxu0 0
    %413 = vmatpush.bf16.msra.mxu0 0
    %414 = vmatpush.bf16.msra.mxu0 %v402
    %415 = vmatpush.bf16.msra.mxu0 %v401
    %416 = vmatmul.bf16.gmra.mxu0 %v406
    %v417 = vpop.f32.mrf.mxu0
    %v418 = vadd.f32 0.0, %v417
    %v419 = vpop.f32.mrf.mxu0
    %420 = vdwg.mxu0
    %422 = vrot.lane.b32.xlu0 %v418, 96
    %v423 = vpop.permute.xlu0 %422
    %v425 = vadd.f32 %v274, %v423
    %v426 = vadd.f32 %v287, %v423
    %v427 = vsub.f32 0.0, %v425
    %v428 = vsub.f32 0.0, %v426
    %v429 = vmul.f32 %v427, 1.442695
    %v430 = vpow.pop %v429
    %v431 = vmul.f32 %v428, 1.442695
    %v432 = vpow.pop %v431
    %v433 = vadd.f32 %v430, 1.0
    %v434 = vadd.f32 %v432, 1.0
    %v435 = vrcp.pop %v433
    %v436 = vmul.f32 %v433, %v435
    %v437 = vsub.f32 1.0, %v436
    %v438 = vmul.f32 %v435, %v437
    %v439 = vadd.f32 %v435, %v438
    %vm440 = vweird.f32 %v433
    %vm441 = vweird.f32 %v435
    %vm442 = vmor %vm440, %vm441
    %v443 = vsel %vm442, %v435, %v439
    %v444 = vand.u32 2147483647, %v433
    %vm445 = vcmp.eq.f32.partialorder %v444, 8.507059e+37
    %v446 = vand.u32 %v433, 2147483648
    %v447 = vor.u32 1.1754944e-38, %v446
    %v448 = vsel %vm445, %v447, %v443
    %v449 = vmul.f32 1.0, %v448
    %v450 = vrcp.pop %v434
    %v451 = vmul.f32 %v434, %v450
    %v452 = vsub.f32 1.0, %v451
    %v453 = vmul.f32 %v450, %v452
    %v454 = vadd.f32 %v450, %v453
    %vm455 = vweird.f32 %v434
    %vm456 = vweird.f32 %v450
    %vm457 = vmor %vm455, %vm456
    %v458 = vsel %vm457, %v450, %v454
    %v459 = vand.u32 2147483647, %v434
    %vm460 = vcmp.eq.f32.partialorder %v459, 8.507059e+37
    %v461 = vand.u32 %v434, 2147483648
    %v462 = vor.u32 1.1754944e-38, %v461
    %v463 = vsel %vm460, %v462, %v458
    %v464 = vmul.f32 1.0, %v463
    %466 = vrot.lane.b32.xlu0 %v464, 64
    %v467 = vpop.permute.xlu0 %466
    %v469 = vmax.f32 %v449, %v467
    %v470 = vmax.f32 %v464, %v467
    %v471 = vpack.c.bf16 %v469, %v469
    %v472 = vpack.c.bf16 %v470, %v470
    %v473 = vld [vmem:[%s9] sm:$0xf]
    %v474 = vld [vmem:[%s9 + $0x4] sm:$0xf]
    %v475 = vld [vmem:[%s9 + $0x8] sm:$0xf]
    %v476 = vld [vmem:[%s9 + $0xc] sm:$0xf]
    %v477 = vld [vmem:[%s9 + $0x10] sm:$0xf]
    %v478 = vld [vmem:[%s9 + $0x14] sm:$0xf]
    %v479 = vld [vmem:[%s9 + $0x18] sm:$0xf]
    %v480 = vld [vmem:[%s9 + $0x1c] sm:$0xf]
    %483 = vrot.lane.b32.xlu0 %v471, 32
    %v484 = vpop.permute.xlu0 %483
    %485 = vrot.lane.b32.xlu0 %v472, 32
    %v486 = vpop.permute.xlu0 %485
    %vm487 = vcmask 261120
    %v488 = vsel %vm487, %v484, %v486
    %v497 = vunpack.c.l.b16 %v473
    %v498 = vunpack.c.l.b16 %v474
    %v499 = vunpack.c.l.b16 %v475
    %v500 = vunpack.c.l.b16 %v476
    %v501 = vunpack.c.l.b16 %v477
    %v502 = vunpack.c.l.b16 %v478
    %v503 = vunpack.c.l.b16 %v479
    %v504 = vunpack.c.l.b16 %v480
    %v505 = vpack.c.b16 %v498, %v497
    %v506 = vpack.c.b16 %v500, %v499
    %v507 = vpack.c.b16 %v502, %v501
    %v508 = vpack.c.b16 %v504, %v503
    %v514 = vsel %vm95, %v488, 0
    %516 = vmatpush.bf16.msra.mxu0 0
    %517 = vmatpush.bf16.msra.mxu0 0
    %518 = vmatpush.bf16.msra.mxu0 0
    %519 = vmatpush.bf16.msra.mxu0 0
    %520 = vmatpush.bf16.msra.mxu0 %v508
    %521 = vmatpush.bf16.msra.mxu0 %v507
    %522 = vmatpush.bf16.msra.mxu0 %v506
    %523 = vmatpush.bf16.msra.mxu0 %v505
    %524 = vmatmul.bf16.gmra.mxu0 %v514
    %v525 = vpop.f32.mrf.mxu0
    %v526 = vadd.f32 0.0, %v525
    %v527 = vpop.f32.mrf.mxu0
    %528 = vdwg.mxu0
    %vm529 = vcmask 122880
    %v530 = vsel %vm529, %v526, -inf
    %531 = vmax.xlane.f32.xlu0 %v530
    %v532 = vpop.xlane.xlu0 %531
    %v533 = vsub.f32 %v526, %v532
    %v534 = vmul.f32 %v533, 1.442695
    %v535 = vpow.pop %v534
    %v536 = vsel %vm529, %v535, 0.0
    %537 = vadd.xlane.f32.xlu0 %v536
    %v538 = vpop.xlane.xlu0 %537
    %v539 = vlog2.pop %v538
    %v540 = vmul.f32 %v539, 0.6931472
    %v541 = vadd.f32 %v540, %v532
    %v542 = vsub.f32 %v526, %v541
    %544 = vrot.lane.b32.xlu0 %v387, 16
    %v545 = vpop.permute.xlu0 %544
    %v547 = vsel %vm197, %v542, %v545
    %vm548 = vcmask 392192
    %v549 = vsel %vm548, %v547, 0.0
    %550 = vst [vmem:[#allocation5] sm:$0x1] %v549
    %551 = vst [vmem:[#allocation6] sm:$0xff] %v186
    // Predicated region
    $region46: #{tpu_custom_call.1} parent=1 // pred_check
      _
    $region47: #{tpu_custom_call.1} parent=1 // pred_check_branch
      %553 = sbr.rel (0) target = $region49
    $region48: #{tpu_custom_call.1} parent=1 // pred_region
      %555 = vsyncadd [#allocation4], 0
      %s557 = sshll.u32 [#allocation5], 4
      %s558 = int_to_ptr.vmem [resolvable:$true] %s557
      %s559 = sshll.u32 %s10, 4
      %s560 = int_to_ptr.hbm [resolvable:$true] %s559
      %562 = dma.vmem_to_hbm [thread:$0]  %s558, 16, %s560, [#allocation4]
    $region49: #{tpu_custom_call.1} parent=1 // pred_fallthru
      _
    // Predicated region
    $region50: #{tpu_custom_call.1} parent=1 // pred_check
      _
    $region51: #{tpu_custom_call.1} parent=1 // pred_check_branch
      %564 = sbr.rel (0) target = $region53
    $region52: #{tpu_custom_call.1} parent=1 // pred_region
      %566 = vsyncadd [#allocation7], 0
      %s568 = sshll.u32 [#allocation6], 4
      %s569 = int_to_ptr.vmem [resolvable:$true] %s568
      %s570 = sshll.u32 %s11, 4
      %s571 = int_to_ptr.hbm [resolvable:$true] %s570
      %573 = dma.vmem_to_hbm [thread:$0]  %s569, 128, %s571, [#allocation7]
    $region53: #{tpu_custom_call.1} parent=1 // pred_fallthru
      _
    // Predicated region
    $region54: #{tpu_custom_call.1} parent=1 // pred_check
      _
    $region55: #{tpu_custom_call.1} parent=1 // pred_check_branch
      %575 = sbr.rel (0) target = $region57
    $region56: #{tpu_custom_call.1} parent=1 // pred_region
      %577 = dma.done [#allocation4], 16
    $region57: #{tpu_custom_call.1} parent=1 // pred_fallthru
      _
    // Predicated region
    $region58: #{tpu_custom_call.1} parent=1 // pred_check
      _
    $region59: #{tpu_custom_call.1} parent=1 // pred_check_branch
      %579 = sbr.rel (0) target = $region61
    $region60: #{tpu_custom_call.1} parent=1 // pred_region
      %581 = dma.done [#allocation7], 128
    $region61: #{tpu_custom_call.1} parent=1 // pred_fallthru
      _
    %582 = vsyncpa [#allocation3], 1
    %583 = vsyncpa [#allocation4], 1
    %584 = vsyncpa [#allocation7], 1

</llo_original>
